<compile_context>
chip_gen: v5e
topology: v5e:2x2
jax: 0.10.0
libtpu: 0.0.40
codegen_flags: <defaults>
</compile_context>

<pallas_src>
import functools

import jax
import jax.numpy as jnp
from jax import lax
from jax.experimental import pallas as pl
from jax.experimental.pallas import tpu as pltpu


def _round_up(x, m):
    return (x + m - 1) // m * m


def _pick_vmem_limit():
    """Generation-aware VMEM request: big on v5e/v6e, conservative on v7x."""
    cap = None
    try:
        cap = getattr(pltpu.get_tpu_info(), "vmem_capacity_bytes", None)
    except Exception:
        cap = None
    if not cap:
        cap = 64 * 1024 * 1024  # assume the smallest (v7x-sized) VMEM
    if cap >= 128 * 1024 * 1024:
        return 100 * 1024 * 1024          # v5e / v6e
    return min(40 * 1024 * 1024, cap * 5 // 8)   # v7x & unknown


def _masked_softmax_from_energy(energy, c_actual, col_axis):
    """softmax(rowmax(E)-E) == exp(rowmin(E)-E)/rowsum: one cross-lane reduce."""
    cp = energy.shape[-1]
    if c_actual != cp:
        col = lax.broadcasted_iota(jnp.int32, energy.shape, col_axis)
        valid = col < c_actual
        e_min = jnp.min(jnp.where(valid, energy, jnp.float32(3.0e38)),
                        axis=-1, keepdims=True)
        p = jnp.where(valid, jnp.exp(e_min - energy), jnp.float32(0.0))
    else:
        e_min = jnp.min(energy, axis=-1, keepdims=True)
        p = jnp.exp(e_min - energy)
    # Exact division: the array is only (.., C, C); approx reciprocal saved
    # nothing here and costs ~1e-3 of normalization accuracy.
    return p / jnp.sum(p, axis=-1, keepdims=True)


# --------------------------------------------------------------------------
# Path A: monolithic kernel — (bt, Cp, Np) slab resident, one grid step each.
# --------------------------------------------------------------------------
def _cam_fused_kernel(gamma_ref, x_ref, o_ref, *, c_actual, matmul_dtype):
    xin = x_ref[...]                              # (bt, Cp, Np), input dtype
    xm = xin.astype(matmul_dtype)                 # MXU operand dtype

    # energy[b, i, j] = sum_n x[b, i, n] * x[b, j, n]   (batched MXU matmul)
    energy = jnp.einsum('bcn,bdn->bcd', xm, xm,
                        preferred_element_type=jnp.float32)
    attn = _masked_softmax_from_energy(energy, c_actual, col_axis=2)

    out = jnp.einsum('bcd,bdn->bcn', attn.astype(matmul_dtype), xm,
                     preferred_element_type=jnp.float32)

    gamma = gamma_ref[0]                          # scalar from SMEM
    o_ref[...] = (gamma * out + xin.astype(jnp.float32)).astype(o_ref.dtype)


# --------------------------------------------------------------------------
# Path B, pass 1: accumulate energy over N-tiles, softmax on the last tile.
# --------------------------------------------------------------------------
def _cam_energy_kernel(x_ref, attn_ref, acc_ref, *, c_actual, matmul_dtype):
    n = pl.program_id(1)

    @pl.when(n == 0)
    def _():
        acc_ref[...] = jnp.zeros_like(acc_ref)

    xt = x_ref[0].astype(matmul_dtype)            # (Cp, tn) slab
    acc_ref[...] += lax.dot_general(
        xt, xt, (((1,), (1,)), ((), ())),
        preferred_element_type=jnp.float32)

    @pl.when(n == pl.num_programs(1) - 1)
    def _():
        attn = _masked_softmax_from_energy(acc_ref[...], c_actual, col_axis=1)
        attn_ref[0] = attn.astype(attn_ref.dtype)   # stored in matmul_dtype


# --------------------------------------------------------------------------
# Path B, pass 2: out_tile = gamma * (attn @ x_tile) + x_tile  (all parallel).
# --------------------------------------------------------------------------
def _cam_apply_kernel(gamma_ref, attn_ref, x_ref, o_ref, *, matmul_dtype):
    attn = attn_ref[0]                            # (Cp, Cp), already matmul_dtype
    xt = x_ref[0]                                 # (Cp, tn), input dtype
    out = lax.dot_general(
        attn, xt.astype(matmul_dtype), (((1,), (0,)), ((), ())),
        preferred_element_type=jnp.float32)
    o_ref[0] = (gamma_ref[0] * out + xt.astype(jnp.float32)).astype(o_ref.dtype)


# --------------------------------------------------------------------------
# Wrapper
# --------------------------------------------------------------------------
def cam_module(x, gamma, *, matmul_dtype=jnp.bfloat16, n_tile=None,
               vmem_limit_bytes=None):
    """x: (B, C, H, W), gamma: (1,) -> (B, C, H, W).

    matmul_dtype: operand dtype for the two MXU matmuls (f32 accumulation).
    n_tile: force the N-tiled two-pass path with this tile width (mult of 128).
    """
    B, C, H, W = x.shape
    N = H * W
    itemsize = jnp.dtype(x.dtype).itemsize
    mm_itemsize = jnp.dtype(matmul_dtype).itemsize

    if vmem_limit_bytes is None:
        vmem_limit_bytes = _pick_vmem_limit()
    budget = max(vmem_limit_bytes - 4 * 1024 * 1024, vmem_limit_bytes // 2)

    # Hardware-friendly padding: sublane multiple for channels (16 when any
    # operand is 16-bit so packed vregs are full), lane multiple (128) for N.
    c_mult = 8 if (itemsize >= 4 and mm_itemsize >= 4) else 16
    Cp = _round_up(max(C, c_mult), c_mult)
    Np = _round_up(N, 128)

    x_flat = x.reshape(B, C, N)

    def maybe_pad(np_target):
        # Skip the pad entirely in the aligned (common UNet) case: the pad is
        # a full extra HBM read+write of x executed by XLA outside the kernel.
        if Cp == C and np_target == N:
            return x_flat
        return jnp.pad(x_flat, ((0, 0), (0, Cp - C), (0, np_target - N)))

    # Conservative per-batch-element VMEM footprint of the monolithic kernel:
    # double-buffered in/out slabs + matmul-dtype copy + full-slab f32 temps
    # (x_f32 / second-matmul output) + (C,C)-sized temporaries.
    per_elem = Cp * Np * (4 * itemsize + 2 * mm_itemsize + 8) + 32 * Cp * Cp
    use_tiled = (n_tile is not None) or (per_elem > budget)

    compiler = functools.partial(pltpu.CompilerParams,
                                 vmem_limit_bytes=vmem_limit_bytes)

    if not use_tiled:
        # Batch-block to amortize the ~0.35us/step overhead when C, N are small,
        # but (a) keep bt a divisor of B (no padded batch elements) and
        # (b) keep >= 2 grid steps so both v7x TensorCores get work.
        bt = int(max(1, min(B, budget // max(1, per_elem))))
        if B >= 2:
            bt = min(bt, max(1, B // 2))
        bt = max(d for d in range(1, bt + 1) if B % d == 0)
        grid_b = B // bt

        x_p = maybe_pad(Np)
        out_p = pl.pallas_call(
            functools.partial(_cam_fused_kernel, c_actual=C,
                              matmul_dtype=matmul_dtype),
            out_shape=jax.ShapeDtypeStruct((B, Cp, Np), x.dtype),
            grid_spec=pltpu.PrefetchScalarGridSpec(
                num_scalar_prefetch=0,
                grid=(grid_b,),
                in_specs=[
                    pl.BlockSpec(memory_space=pltpu.SMEM),            # gamma
                    pl.BlockSpec((bt, Cp, Np), lambda b: (b, 0, 0)),  # x slab
                ],
                out_specs=pl.BlockSpec((bt, Cp, Np), lambda b: (b, 0, 0)),
            ),
            compiler_params=compiler(dimension_semantics=("parallel",)),
        )(gamma, x_p)
        out_np = Np
    else:
        if n_tile is not None:
            tn = min(_round_up(max(n_tile, 128), 128), Np)
        else:
            # Adaptive tile: biggest multiple of 128 fitting ~60% of the budget,
            # preferring one that divides Np (no padded tail tiles).
            per_tn = Cp * (4 * itemsize + mm_itemsize + 4)
            fixed = Cp * Cp * (2 * mm_itemsize + 16)
            avail = budget * 6 // 10 - fixed
            tn = 128 if avail <= 0 else int(avail // max(1, per_tn))
            tn = max(128, min((tn // 128) * 128, Np, 4096))
            k = tn // 128
            while k > 1 and Np % (k * 128) != 0:
                k -= 1
            tn = k * 128
        Np_t = _round_up(Np, tn)
        num_nt = Np_t // tn
        x_p = maybe_pad(Np_t)

        # Pass 1: energy accumulation + softmax -> attention (B, Cp, Cp),
        # stored in matmul_dtype to halve its HBM round-trip into pass 2.
        attn = pl.pallas_call(
            functools.partial(_cam_energy_kernel, c_actual=C,
                              matmul_dtype=matmul_dtype),
            out_shape=jax.ShapeDtypeStruct((B, Cp, Cp), matmul_dtype),
            grid_spec=pltpu.PrefetchScalarGridSpec(
                num_scalar_prefetch=0,
                grid=(B, num_nt),
                in_specs=[pl.BlockSpec((1, Cp, tn), lambda b, n: (b, 0, n))],
                out_specs=pl.BlockSpec((1, Cp, Cp), lambda b, n: (b, 0, 0)),
                scratch_shapes=[pltpu.VMEM((Cp, Cp), jnp.float32)],
            ),
            compiler_params=compiler(
                dimension_semantics=("parallel", "arbitrary")),
        )(x_p)

        # Pass 2: apply attention + residual; both grid axes parallel so v7x's
        # two TensorCores both get work even when B == 1.
        out_p = pl.pallas_call(
            functools.partial(_cam_apply_kernel, matmul_dtype=matmul_dtype),
            out_shape=jax.ShapeDtypeStruct((B, Cp, Np_t), x.dtype),
            grid_spec=pltpu.PrefetchScalarGridSpec(
                num_scalar_prefetch=0,
                grid=(B, num_nt),
                in_specs=[
                    pl.BlockSpec(memory_space=pltpu.SMEM),               # gamma
                    pl.BlockSpec((1, Cp, Cp), lambda b, n: (b, 0, 0)),   # attn
                    pl.BlockSpec((1, Cp, tn), lambda b, n: (b, 0, n)),   # x tile
                ],
                out_specs=pl.BlockSpec((1, Cp, tn), lambda b, n: (b, 0, n)),
            ),
            compiler_params=compiler(
                dimension_semantics=("parallel", "parallel")),
        )(gamma, attn, x_p)
        out_np = Np_t

    out_flat = out_p if (Cp == C and out_np == N) else out_p[:, :C, :N]
    # PyTorch does out.view(B, C, H, W): a pure reshape (the module is only
    # consistent for square spatial dims, where this is exactly that reshape).
    return out_flat.reshape(B, C, H, W)


# --------------------------------------------------------------------------
# Pure-JAX reference mirroring the PyTorch forward (optionally with the same
# matmul-operand quantization as the kernel, for apples-to-apples checks).
# --------------------------------------------------------------------------
def cam_reference(x, gamma, matmul_dtype=jnp.float32):
    B, C, H, W = x.shape
    q = x.reshape(B, C, -1)                                   # (B, C, N)
    qm = q.astype(matmul_dtype)
    energy = jnp.einsum('bcn,bmn->bcm', qm, qm,
                        preferred_element_type=jnp.float32,
                        precision=jax.lax.Precision.HIGHEST)  # (B, C, C)
    energy_new = jnp.max(energy, -1, keepdims=True) - energy
    attention = jax.nn.softmax(energy_new, axis=-1)
    out = jnp.einsum('bcm,bmn->bcn', attention.astype(matmul_dtype), qm,
                     preferred_element_type=jnp.float32,
                     precision=jax.lax.Precision.HIGHEST)     # (B, C, N)
    return gamma[0] * out.reshape(B, C, H, W) + x


if __name__ == "__main__":
    key = jax.random.PRNGKey(0)
    k1, k2 = jax.random.split(key)

    gamma = jnp.array([0.5], dtype=jnp.float32)  # nonzero so attention matters

    # Moderate-scale inputs keep the channel softmax well conditioned, so the
    # kernel/reference comparison is robust to MXU-vs-XLA rounding differences.
    B, C, H, W = 2, 4, 16, 16
    x = 0.25 * jax.random.normal(k1, (B, C, H, W), dtype=jnp.float32)

    # --- Test 1: default bf16 MXU operands (monolithic path) vs bf16-quantized ref.
    out_bf = jax.block_until_ready(cam_module(x, gamma))
    ref_bf = cam_reference(x, gamma, matmul_dtype=jnp.bfloat16)
    assert out_bf.shape == (B, C, H, W)
    assert jnp.allclose(out_bf, ref_bf, atol=2e-2, rtol=2e-2), "bf16 monolithic mismatch"

    # --- Test 2: f32 MXU operands (monolithic path) vs f32 reference.
    out_f32 = jax.block_until_ready(cam_module(x, gamma, matmul_dtype=jnp.float32))
    ref_f32 = cam_reference(x, gamma, matmul_dtype=jnp.float32)
    assert jnp.allclose(out_f32, ref_f32, atol=2e-2, rtol=2e-2), "f32 monolithic mismatch"

    # --- Test 3: forced N-tiled two-pass path (also exercises C padding/mask).
    B2, C2, H2, W2 = 1, 20, 16, 16
    x2 = 0.25 * jax.random.normal(k2, (B2, C2, H2, W2), dtype=jnp.float32)
    out_t = jax.block_until_ready(cam_module(x2, gamma, n_tile=128))
    ref_t = cam_reference(x2, gamma, matmul_dtype=jnp.bfloat16)
    assert out_t.shape == (B2, C2, H2, W2)
    assert jnp.allclose(out_t, ref_t, atol=2e-2, rtol=2e-2), "tiled two-pass mismatch"

    print("KERNEL_OK")
</pallas_src>

<mosaic_0001>
module attributes {stable_mosaic.version = 11 : i64} {
  func.func @_cam_fused_kernel(%arg0: i32, %arg1: memref<1xf32, #tpu.memory_space<smem>>, %arg2: memref<1x16x256xf32, #tpu.memory_space<vmem>>, %arg3: memref<1x16x256xf32, #tpu.memory_space<vmem>>) attributes {dimension_semantics = [#tpu.dimension_semantics<parallel>], iteration_bounds = array<i64: 2>, scalar_prefetch = 0 : i64, scratch_operands = 0 : i64, tpu.core_type = #tpu.core_type<tc>, window_params = [{transform_indices = @transform_0, window_bounds = array<i64: 1>}, {transform_indices = @transform_1, window_bounds = array<i64: 1, 16, 256>}, {transform_indices = @transform_2, window_bounds = array<i64: 1, 16, 256>}]} {
    %c0 = arith.constant 0 : index
    %c0_0 = arith.constant 0 : index
    %c0_1 = arith.constant 0 : index
    %0 = vector.load %arg2[%c0, %c0_0, %c0_1] : memref<1x16x256xf32, #tpu.memory_space<vmem>>, vector<1x16x256xf32>
    %1 = arith.truncf %0 : vector<1x16x256xf32> to vector<1x16x256xbf16>
    "tpu.trace_start"() <{level = 10 : i32, message = "bcn,bdn->bcd"}> : () -> ()
    %cst = arith.constant dense<0.000000e+00> : vector<1x16x16xf32>
    %2 = tpu.matmul %1, %1, %cst {dimension_numbers = #tpu.dot_dimension_numbers<[2], [2], [1], [1], [0, 0, 0, 1, 1, 1], [0], [0]>} : vector<1x16x256xbf16>, vector<1x16x256xbf16>, vector<1x16x16xf32> -> vector<1x16x16xf32>
    "tpu.trace_stop"() : () -> ()
    %3 = tpu.iota {dimensions = array<i32: 2>} : vector<1x16x16xi32>
    %c4_i32 = arith.constant 4 : i32
    %4 = vector.broadcast %c4_i32 : i32 to vector<1x16x16xi32>
    %5 = arith.cmpi slt, %3, %4 : vector<1x16x16xi32>
    %cst_2 = arith.constant 3.000000e+38 : f32
    %6 = vector.broadcast %cst_2 : f32 to vector<1x16x16xf32>
    %7 = arith.select %5, %2, %6 : vector<1x16x16xi1>, vector<1x16x16xf32>
    %cst_3 = arith.constant dense<0x7F800000> : vector<1x16xf32>
    %8 = vector.multi_reduction <minimumf>, %7, %cst_3 [2] : vector<1x16x16xf32> to vector<1x16xf32>
    %9 = vector.shape_cast %8 : vector<1x16xf32> to vector<1x16x1xf32>
    %10 = vector.broadcast %9 : vector<1x16x1xf32> to vector<1x16x16xf32>
    %11 = arith.subf %10, %2 : vector<1x16x16xf32>
    %12 = math.exp %11 : vector<1x16x16xf32>
    %cst_4 = arith.constant 0.000000e+00 : f32
    %13 = vector.broadcast %cst_4 : f32 to vector<1x16x16xf32>
    %14 = arith.select %5, %12, %13 : vector<1x16x16xi1>, vector<1x16x16xf32>
    %cst_5 = arith.constant dense<0.000000e+00> : vector<1x16xf32>
    %15 = vector.multi_reduction <add>, %14, %cst_5 [2] : vector<1x16x16xf32> to vector<1x16xf32>
    %16 = vector.shape_cast %15 : vector<1x16xf32> to vector<1x16x1xf32>
    %17 = vector.broadcast %16 : vector<1x16x1xf32> to vector<1x16x16xf32>
    %18 = arith.divf %14, %17 : vector<1x16x16xf32>
    %19 = arith.truncf %18 : vector<1x16x16xf32> to vector<1x16x16xbf16>
    "tpu.trace_start"() <{level = 10 : i32, message = "bcd,bdn->bcn"}> : () -> ()
    %cst_6 = arith.constant dense<0.000000e+00> : vector<1x16x256xf32>
    %20 = tpu.matmul %19, %1, %cst_6 {dimension_numbers = #tpu.dot_dimension_numbers<[2], [1], [1], [2], [0, 0, 0, 1, 1, 2], [0], [0]>} : vector<1x16x16xbf16>, vector<1x16x256xbf16>, vector<1x16x256xf32> -> vector<1x16x256xf32>
    "tpu.trace_stop"() : () -> ()
    %c0_7 = arith.constant 0 : index
    %21 = memref.load %arg1[%c0_7] : memref<1xf32, #tpu.memory_space<smem>>
    %22 = vector.broadcast %21 : f32 to vector<1x16x256xf32>
    %23 = arith.mulf %22, %20 : vector<1x16x256xf32>
    %24 = arith.addf %23, %0 : vector<1x16x256xf32>
    %c0_8 = arith.constant 0 : index
    %c0_9 = arith.constant 0 : index
    %c0_10 = arith.constant 0 : index
    %25 = vector.load %arg3[%c0_8, %c0_9, %c0_10] : memref<1x16x256xf32, #tpu.memory_space<vmem>>, vector<1x16x256xf32>
    tpu.vector_store %arg3[%c0_8, %c0_9, %c0_10], %24 {strides = array<i32>} : memref<1x16x256xf32, #tpu.memory_space<vmem>>, vector<1x16x256xf32>,
    return
  }
  func.func @transform_0(%arg0: i32) -> i32 {
    %c0_i32 = arith.constant 0 : i32
    %c0_i32_0 = arith.constant 0 : i32
    return %c0_i32 : i32
  }
  func.func @transform_1(%arg0: i32) -> (i32, i32, i32) {
    %c0_i32 = arith.constant 0 : i32
    %c0_i32_0 = arith.constant 0 : i32
    %c0_i32_1 = arith.constant 0 : i32
    return %arg0, %c0_i32, %c0_i32_0 : i32, i32, i32
  }
  func.func @transform_2(%arg0: i32) -> (i32, i32, i32) {
    %c0_i32 = arith.constant 0 : i32
    %c0_i32_0 = arith.constant 0 : i32
    %c0_i32_1 = arith.constant 0 : i32
    return %arg0, %c0_i32, %c0_i32_0 : i32, i32, i32
  }
}

</mosaic_0001>

<llo_original>
// kernel: tpu_custom_call.1
$region0: #{tpu_custom_call.1}
  #allocation0 [shape = 'u32[]', space=smem, size = 0x4, offset = 0x4, fixed_abs, tag = 'smem constant byte address 0x4 - core index']
  #allocation1 [shape = 'u32[72,128]{1,0:T(1,128)}', space=vmem, size = 0x9000, scoped, tag = 'internal scratch']
  #allocation2 [shape = 'f32[1]{0:T(128)S(6)}', space=smem, size = 0x200, scoped, tag = 'scoped memory for tpu_custom_call.1']
  %s0 = inlined_call_operand.<no memory space> [shape: f32[1], index: 0, kind: input, shape index: {}]
  %s1 = inlined_call_operand.hbm [shape: f32[2,16,256], index: 1, kind: input, shape index: {}]
  %s2 = inlined_call_operand.hbm [shape: f32[2,16,256], index: 2, kind: output, shape index: {}]
  %s3 = sld [smem:[#allocation0]]
  $region45: #{tpu_custom_call.1} parent=0
    _
  %s5 = ssub.s32 1, %s3
  %s6 = scalar_select 0, %s5, %s3
  %7 = sst [smem:[#allocation2]] %s0
  $region1: #{tpu_custom_call.1} parent=0
    #allocation3 [shape = 'u8[32768]{0}', space=vmem, size = 0x8000, scoped, tag = 'input window, operand 1']
    #allocation4 [shape = 's32[2]{0}', space=sflag, size = 0x8, scoped, tag = 'scoped memory for tpu_custom_call.1']
    #allocation5 [shape = 's32[2]{0}', space=sflag, size = 0x8, scoped, tag = 'scoped memory for tpu_custom_call.1']
    #allocation6 [shape = 'u8[32768]{0}', space=vmem, size = 0x8000, scoped, tag = 'output window, operand 0']
    %8 = vsyncpa [#allocation4], 0
    %s9 = scalar_lea.sflag [#allocation4], 1
    %10 = vsyncpa %s9, 0
    %11 = vsyncpa [#allocation5], 0
    %s12 = scalar_lea.sflag [#allocation5], 1
    %13 = vsyncpa %s12, 0
    loop: start=0, step=1, limit=4
    $region2: #{tpu_custom_call.1} parent=1 // loop_pre_header
      _
    $region3: #{tpu_custom_call.1} parent=1 // loop_header
      %s15 = sphi 0, %s19
      %p16 = scmp.ge.s32.totalorder %s15, 4
      %s23 = sphi 0, %s23
      %s25 = sphi 0, %s23
      %s26 = sphi 0, %s25
      %s40 = sphi 0, %s26
      %s46 = sphi 0, %s48
      %s49 = sphi 0, %s46
      %s50 = sphi 0, %s49
      %s66 = sphi 0, %s50
      %s72 = sphi 0, %s74
      %s75 = sphi 0, %s72
      %s76 = sphi 0, %s75
      %s92 = sphi 0, %s76
    $region4: #{tpu_custom_call.1} parent=1 // loop_header_branch
      %18 = sbr.rel (%p16) target = $region8
    $region5: #{tpu_custom_call.1} parent=1 // loop_body
      %s20 = ssub.s32 %s15, 1
      %s21 = ssub.s32 %s15, 2
      %s22 = sadd.s32 %s15, 1
      %s24 = sadd.s32 %s23, 1
      %p27 = scmp.eq.s32.totalorder %s15, 1
      %p28 = scmp.ne.s32.totalorder %s23, %s25
      %p29 = scmp.eq.s32.totalorder %s15, 0
      %p30 = por %p28, %p29
      %p31 = scmp.ne.s32.totalorder %s23, %s25
      %p32 = scmp.eq.s32.totalorder %s20, 1
      %p33 = por %p31, %p32
      %p34 = scmp.ne.s32.totalorder %s25, %s26
      %p35 = scmp.eq.s32.totalorder %s20, 0
      %p36 = por %p34, %p35
      %p37 = scmp.ne.s32.totalorder %s25, %s26
      %p38 = scmp.eq.s32.totalorder %s21, 1
      %p39 = por %p37, %p38
      %p41 = scmp.ne.s32.totalorder %s26, %s40
      %p42 = scmp.eq.s32.totalorder %s21, 0
      %p43 = por %p41, %p42
      %s44 = ssub.s32 %s15, %s22
      %p45 = scmp.eq.s32.totalorder %s44, 0
      %s47 = sadd.s32 %s46, 1
      %s48 = scalar_select %p45, %s46, %s47
      %p51 = pneg %p45
      %p52 = scmp.eq.s32.totalorder %s15, 1
      %p53 = por %p51, %p52
      %p54 = scmp.ne.s32.totalorder %s46, %s49
      %p55 = scmp.eq.s32.totalorder %s15, 0
      %p56 = por %p54, %p55
      %p57 = scmp.ne.s32.totalorder %s46, %s49
      %p58 = scmp.eq.s32.totalorder %s20, 1
      %p59 = por %p57, %p58
      %p60 = scmp.ne.s32.totalorder %s49, %s50
      %p61 = scmp.eq.s32.totalorder %s20, 0
      %p62 = por %p60, %p61
      %p63 = scmp.ne.s32.totalorder %s49, %s50
      %p64 = scmp.eq.s32.totalorder %s21, 1
      %p65 = por %p63, %p64
      %p67 = scmp.ne.s32.totalorder %s50, %s66
      %p68 = scmp.eq.s32.totalorder %s21, 0
      %p69 = por %p67, %p68
      %s70 = ssub.s32 %s15, %s22
      %p71 = scmp.eq.s32.totalorder %s70, 0
      %s73 = sadd.s32 %s72, 1
      %s74 = scalar_select %p71, %s72, %s73
      %p77 = pneg %p71
      %p78 = scmp.eq.s32.totalorder %s15, 1
      %p79 = por %p77, %p78
      %p80 = scmp.ne.s32.totalorder %s72, %s75
      %p81 = scmp.eq.s32.totalorder %s15, 0
      %p82 = por %p80, %p81
      %p83 = scmp.ne.s32.totalorder %s72, %s75
      %p84 = scmp.eq.s32.totalorder %s20, 1
      %p85 = por %p83, %p84
      %p86 = scmp.ne.s32.totalorder %s75, %s76
      %p87 = scmp.eq.s32.totalorder %s20, 0
      %p88 = por %p86, %p87
      %p89 = scmp.ne.s32.totalorder %s75, %s76
      %p90 = scmp.eq.s32.totalorder %s21, 1
      %p91 = por %p89, %p90
      %p93 = scmp.ne.s32.totalorder %s76, %s92
      %p94 = scmp.eq.s32.totalorder %s21, 0
      %p95 = por %p93, %p94
      %p96 = scmp.le.s32.totalorder 1, %s15
      %p97 = scmp.lt.s32.totalorder %s15, 3
      %p98 = pnand %p96, %p97
      %p99 = pneg %p98
      // Predicated region
      $region9: #{tpu_custom_call.1} parent=5 // pred_check
        _
      $region10: #{tpu_custom_call.1} parent=5 // pred_check_branch
        %101 = sbr.rel (%p98) target = $region12
      $region11: #{tpu_custom_call.1} parent=5 // pred_region
        %s102 = ssub.s32 %s15, 1
        // Predicated region
        $region13: #{tpu_custom_call.1} parent=11 // pred_check
          %p103 = pneg %p36
        $region14: #{tpu_custom_call.1} parent=11 // pred_check_branch
          %105 = sbr.rel (%p103) target = $region16
        $region15: #{tpu_custom_call.1} parent=11 // pred_region
          _
        $region16: #{tpu_custom_call.1} parent=11 // pred_fallthru
          _
      $region12: #{tpu_custom_call.1} parent=5 // pred_fallthru
        _
      %p106 = scmp.lt.s32.totalorder %s15, 2
      // Predicated region
      $region17: #{tpu_custom_call.1} parent=5 // pred_check
        %p107 = pneg %p106
      $region18: #{tpu_custom_call.1} parent=5 // pred_check_branch
        %109 = sbr.rel (%p107) target = $region20
      $region19: #{tpu_custom_call.1} parent=5 // pred_region
        // Predicated region
        $region21: #{tpu_custom_call.1} parent=19 // pred_check
          %p110 = pneg %p56
        $region22: #{tpu_custom_call.1} parent=19 // pred_check_branch
          %112 = sbr.rel (%p110) target = $region24
        $region23: #{tpu_custom_call.1} parent=19 // pred_region
          %s113 = sand.u32 %s46, 1
          %s114 = scalar_lea.sflag [#allocation4], %s113
          %s115 = sand.u32 %s46, 1
          %s116 = smul.addr %s115, 32
          %s117 = scalar_lea.vmem [#allocation3], %s116
          %119 = vsyncadd %s114, 0
          %s120 = smul.addr %s15, 4
          %s121 = smul.addr %s120, 8
          %s122 = scalar_lea.hbm %s1, %s121
          %s123 = sshll.u32 %s122, 4
          %s124 = int_to_ptr.hbm [resolvable:$true] %s123
          %s125 = sshll.u32 %s117, 4
          %s126 = int_to_ptr.vmem [resolvable:$true] %s125
          %131 = dma.hbm_to_vmem [thread:$0]  %s124, 512, %s126, %s114, 256, 256, 16
        $region24: #{tpu_custom_call.1} parent=19 // pred_fallthru
          _
      $region20: #{tpu_custom_call.1} parent=5 // pred_fallthru
        _
      %p132 = scmp.le.s32.totalorder 1, %s15
      %p133 = scmp.lt.s32.totalorder %s15, 3
      %p134 = pnand %p132, %p133
      %p135 = pneg %p134
      // Predicated region
      $region25: #{tpu_custom_call.1} parent=5 // pred_check
        _
      $region26: #{tpu_custom_call.1} parent=5 // pred_check_branch
        %137 = sbr.rel (%p134) target = $region28
      $region27: #{tpu_custom_call.1} parent=5 // pred_region
        %s138 = ssub.s32 %s15, 1
        %s139 = sand.u32 %s49, 1
        %s140 = scalar_lea.sflag [#allocation4], %s139
        %s141 = sand.u32 %s49, 1
        %s142 = smul.addr %s141, 32
        %s143 = scalar_lea.vmem [#allocation3], %s142
        // Predicated region
        $region29: #{tpu_custom_call.1} parent=27 // pred_check
          %p144 = pneg %p62
        $region30: #{tpu_custom_call.1} parent=27 // pred_check_branch
          %146 = sbr.rel (%p144) target = $region32
        $region31: #{tpu_custom_call.1} parent=27 // pred_region
          %148 = dma.done %s140, 512
        $region32: #{tpu_custom_call.1} parent=27 // pred_fallthru
          _
        %p149 = pneg %p36
        %p150 = pneg %p33
        %s151 = sand.u32 %s49, 1
        %s152 = scalar_lea.sflag [#allocation4], %s151
        %s153 = sand.u32 %s49, 1
        %s154 = smul.addr %s153, 32
        %s155 = scalar_lea.vmem [#allocation3], %s154
        %p156 = pneg %p62
        %p157 = pneg %p59
        %p158 = pneg %p88
        %p159 = pneg %p85
        %s160 = sand.u32 %s75, 1
        %s161 = scalar_lea.sflag [#allocation5], %s160
        %s162 = sand.u32 %s75, 1
        %s163 = smul.addr %s162, 32
        %s164 = scalar_lea.vmem [#allocation6], %s163
        %v166 = vld [vmem:[%s143] sm:$0xff]
        %v167 = vld [vmem:[%s143 + $0x8] sm:$0xff]
        %v168 = vld [vmem:[%s143 + $0x10] sm:$0xff]
        %v169 = vld [vmem:[%s143 + $0x18] sm:$0xff]
        %v170 = vpack.c.bf16 %v167, %v166
        %v171 = vpack.c.bf16 %v169, %v168
        %v174 = vunpack.c.l.b16 %v170
        %v175 = vunpack.c.h.b16 %v170
        %v176 = vunpack.c.l.b16 %v171
        %v177 = vunpack.c.h.b16 %v171
        %v178 = vpack.c.b16 %v176, %v174
        %v179 = vpack.c.b16 %v177, %v175
        %182 = vmatpush.bf16.xpose.msra.mxu0 0
        %183 = vmatpush.bf16.xpose.msra.mxu0 0
        %184 = vmatpush.bf16.xpose.msra.mxu0 0
        %185 = vmatpush.bf16.xpose.msra.mxu0 0
        %186 = vmatpush.bf16.xpose.msra.mxu0 0
        %187 = vmatpush.bf16.xpose.msra.mxu0 0
        %188 = vmatpush.bf16.xpose.msra.mxu0 0
        %189 = vmatpush.bf16.xpose.msra.mxu0 %v178
        %190 = vmatmul.bf16.gmra.mxu0 %v178
        %v191 = vpop.f32.mrf.mxu0
        %v192 = vadd.f32 0.0, %v191
        %v193 = vpop.f32.mrf.mxu0
        %v194 = vadd.f32 0.0, %v193
        %195 = vdwg.mxu0
        %196 = vmatpush.bf16.xpose.msra.mxu0 0
        %197 = vmatpush.bf16.xpose.msra.mxu0 0
        %198 = vmatpush.bf16.xpose.msra.mxu0 0
        %199 = vmatpush.bf16.xpose.msra.mxu0 0
        %200 = vmatpush.bf16.xpose.msra.mxu0 0
        %201 = vmatpush.bf16.xpose.msra.mxu0 0
        %202 = vmatpush.bf16.xpose.msra.mxu0 0
        %203 = vmatpush.bf16.xpose.msra.mxu0 %v179
        %204 = vmatmul.bf16.gmra.mxu0 %v179
        %v205 = vpop.f32.mrf.mxu0
        %v206 = vadd.f32 %v192, %v205
        %v207 = vpop.f32.mrf.mxu0
        %v208 = vadd.f32 %v194, %v207
        %209 = vdwg.mxu0
        %v210 = vlaneseq
        %v211 = vand.u32 %v210, 127
        %vm212 = vcmp.lt.s32.totalorder %v211, 4
        %v213 = vsel %vm212, %v206, 3e+38
        %v214 = vsel %vm212, %v208, 3e+38
        %vm215 = vcmask 130048
        %v216 = vsel %vm215, %v213, inf
        %217 = vmin.xlane.f32.xlu0 %v216
        %v218 = vpop.xlane.xlu0 %217
        %v219 = vsel %vm215, %v214, inf
        %220 = vmin.xlane.f32.xlu0 %v219
        %v221 = vpop.xlane.xlu0 %220
        %v222 = vsub.f32 %v218, %v206
        %v223 = vsub.f32 %v221, %v208
        %v224 = vmul.f32 %v222, 1.442695
        %v225 = vpow.pop %v224
        %v226 = vmul.f32 %v223, 1.442695
        %v227 = vpow.pop %v226
        %v228 = vsel %vm212, %v225, 0.0
        %v229 = vsel %vm212, %v227, 0.0
        %v230 = vsel %vm215, %v228, 0.0
        %231 = vadd.xlane.f32.xlu0 %v230
        %v232 = vpop.xlane.xlu0 %231
        %v233 = vsel %vm215, %v229, 0.0
        %234 = vadd.xlane.f32.xlu0 %v233
        %v235 = vpop.xlane.xlu0 %234
        %v236 = vrcp.pop %v232
        %v237 = vmul.f32 %v232, %v236
        %v238 = vsub.f32 1.0, %v237
        %v239 = vmul.f32 %v236, %v238
        %v240 = vadd.f32 %v236, %v239
        %vm241 = vweird.f32 %v232
        %vm242 = vweird.f32 %v236
        %vm243 = vmor %vm241, %vm242
        %v244 = vsel %vm243, %v236, %v240
        %v245 = vand.u32 2147483647, %v232
        %vm246 = vcmp.eq.f32.partialorder %v245, 8.507059e+37
        %v247 = vand.u32 %v232, 2147483648
        %v248 = vor.u32 1.1754944e-38, %v247
        %v249 = vsel %vm246, %v248, %v244
        %v250 = vmul.f32 %v228, %v249
        %v251 = vrcp.pop %v235
        %v252 = vmul.f32 %v235, %v251
        %v253 = vsub.f32 1.0, %v252
        %v254 = vmul.f32 %v251, %v253
        %v255 = vadd.f32 %v251, %v254
        %vm256 = vweird.f32 %v235
        %vm257 = vweird.f32 %v251
        %vm258 = vmor %vm256, %vm257
        %v259 = vsel %vm258, %v251, %v255
        %v260 = vand.u32 2147483647, %v235
        %vm261 = vcmp.eq.f32.partialorder %v260, 8.507059e+37
        %v262 = vand.u32 %v235, 2147483648
        %v263 = vor.u32 1.1754944e-38, %v262
        %v264 = vsel %vm261, %v263, %v259
        %v265 = vmul.f32 %v229, %v264
        %v266 = vpack.c.bf16 %v250, %v250
        %v267 = vpack.c.bf16 %v265, %v265
        %v270 = vunpack.c.l.b16 %v266
        %v271 = vunpack.c.l.b16 %v267
        %v272 = vpack.c.b16 %v271, %v270
        %v274 = vsel %vm215, %v272, 0
        %276 = vmatpush.bf16.msra.mxu0 0
        %277 = vmatpush.bf16.msra.mxu0 0
        %278 = vmatpush.bf16.msra.mxu0 0
        %279 = vmatpush.bf16.msra.mxu0 0
        %280 = vmatpush.bf16.msra.mxu0 0
        %281 = vmatpush.bf16.msra.mxu0 0
        %282 = vmatpush.bf16.msra.mxu0 0
        %283 = vmatpush.bf16.msra.mxu0 %v178
        %284 = vmatmul.bf16.gmra.mxu0 %v274
        %v285 = vpop.f32.mrf.mxu0
        %v286 = vadd.f32 0.0, %v285
        %v287 = vpop.f32.mrf.mxu0
        %v288 = vadd.f32 0.0, %v287
        %289 = vdwg.mxu0
        %290 = vmatpush.bf16.msra.mxu0 0
        %291 = vmatpush.bf16.msra.mxu0 0
        %292 = vmatpush.bf16.msra.mxu0 0
        %293 = vmatpush.bf16.msra.mxu0 0
        %294 = vmatpush.bf16.msra.mxu0 0
        %295 = vmatpush.bf16.msra.mxu0 0
        %296 = vmatpush.bf16.msra.mxu0 0
        %297 = vmatpush.bf16.msra.mxu0 %v179
        %298 = vmatmul.bf16.gmra.mxu0 %v274
        %v299 = vpop.f32.mrf.mxu0
        %v300 = vadd.f32 0.0, %v299
        %v301 = vpop.f32.mrf.mxu0
        %v302 = vadd.f32 0.0, %v301
        %303 = vdwg.mxu0
        %s304 = sld [smem:[#allocation2]]
        %v305 = vstv %s304
        %v306 = vmul.f32 %v305, %v286
        %v307 = vmul.f32 %v305, %v300
        %v308 = vmul.f32 %v305, %v288
        %v309 = vmul.f32 %v305, %v302
        %v310 = vadd.f32 %v306, %v166
        %v311 = vadd.f32 %v307, %v167
        %v312 = vadd.f32 %v308, %v168
        %v313 = vadd.f32 %v309, %v169
        %314 = vst [vmem:[%s164] sm:$0xff] %v310
        %315 = vst [vmem:[%s164 + $0x8] sm:$0xff] %v311
        %316 = vst [vmem:[%s164 + $0x10] sm:$0xff] %v312
        %317 = vst [vmem:[%s164 + $0x18] sm:$0xff] %v313
        %s318 = sand.u32 %s75, 1
        %s319 = scalar_lea.sflag [#allocation5], %s318
        %s320 = sand.u32 %s75, 1
        %s321 = smul.addr %s320, 32
        %s322 = scalar_lea.vmem [#allocation6], %s321
        // Predicated region
        $region33: #{tpu_custom_call.1} parent=27 // pred_check
          %p323 = pneg %p85
        $region34: #{tpu_custom_call.1} parent=27 // pred_check_branch
          %325 = sbr.rel (%p323) target = $region36
        $region35: #{tpu_custom_call.1} parent=27 // pred_region
          %327 = vsyncadd %s319, 0
          %s328 = smul.addr %s20, 4
          %s329 = smul.addr %s328, 8
          %s330 = scalar_lea.hbm %s2, %s329
          %s331 = sshll.u32 %s322, 4
          %s332 = int_to_ptr.vmem [resolvable:$true] %s331
          %s333 = sshll.u32 %s330, 4
          %s334 = int_to_ptr.hbm [resolvable:$true] %s333
          %339 = dma.vmem_to_hbm [thread:$0]  %s332, 512, %s334, %s319, 256, 256, 16
        $region36: #{tpu_custom_call.1} parent=27 // pred_fallthru
          _
      $region28: #{tpu_custom_call.1} parent=5 // pred_fallthru
        _
      %p340 = scmp.le.s32.totalorder 2, %s15
      // Predicated region
      $region37: #{tpu_custom_call.1} parent=5 // pred_check
        %p341 = pneg %p340
      $region38: #{tpu_custom_call.1} parent=5 // pred_check_branch
        %343 = sbr.rel (%p341) target = $region40
      $region39: #{tpu_custom_call.1} parent=5 // pred_region
        %s344 = ssub.s32 %s15, 2
        // Predicated region
        $region41: #{tpu_custom_call.1} parent=39 // pred_check
          %p345 = pneg %p91
        $region42: #{tpu_custom_call.1} parent=39 // pred_check_branch
          %347 = sbr.rel (%p345) target = $region44
        $region43: #{tpu_custom_call.1} parent=39 // pred_region
          %s348 = sand.u32 %s76, 1
          %s349 = scalar_lea.sflag [#allocation5], %s348
          %s350 = sand.u32 %s76, 1
          %s351 = smul.addr %s350, 32
          %s352 = scalar_lea.vmem [#allocation6], %s351
          %354 = dma.done %s349, 512
        $region44: #{tpu_custom_call.1} parent=39 // pred_fallthru
          _
      $region40: #{tpu_custom_call.1} parent=5 // pred_fallthru
        _
    $region6: #{tpu_custom_call.1} parent=1 // loop_footer
      %s19 = sadd.s32 1, %s15
    $region7: #{tpu_custom_call.1} parent=1 // loop_footer_branch
      %14 = sbr.rel target = $region3
    $region8: #{tpu_custom_call.1} parent=1 // loop_exit
      _
    %355 = vsyncpa [#allocation4], 1
    %s356 = scalar_lea.sflag [#allocation4], 1
    %357 = vsyncpa %s356, 1
    %358 = vsyncpa [#allocation5], 1
    %s359 = scalar_lea.sflag [#allocation5], 1
    %360 = vsyncpa %s359, 1

</llo_original>
